<compile_context>
chip_gen: v6e
topology: v6e:2x2x1
jax: 0.10.0
libtpu: 0.0.40
codegen_flags: <defaults>
</compile_context>

<pallas_src>
import functools
import math

import jax
import jax.numpy as jnp
from jax import lax
from jax.experimental import pallas as pl
from jax.experimental.pallas import tpu as pltpu


def _cdiv(a, b):
    return -(-a // b)


def _round_up(x, m):
    return ((x + m - 1) // m) * m


# Abramowitz & Stegun 7.1.26 erf approximation (max abs error ~1.5e-7).
_ERF_P = 0.3275911
_ERF_A1 = 0.254829592
_ERF_A2 = -0.284496736
_ERF_A3 = 1.421413741
_ERF_A4 = -1.453152027
_ERF_A5 = 1.061405429


def _erf_approx(x):
    """erf(x) via A&S 7.1.26; divide replaced by EUP approx reciprocal + 1 Newton step."""
    ax = jnp.abs(x)
    d = 1.0 + _ERF_P * ax
    t = pl.reciprocal(d, approx=True)     # EUP slot (has slack), ~2^-12 rel err
    t = t * (2.0 - d * t)                 # one Newton step -> ~1e-7 rel err
    poly = ((((_ERF_A5 * t + _ERF_A4) * t + _ERF_A3) * t + _ERF_A2) * t + _ERF_A1) * t
    y = 1.0 - poly * jnp.exp(-(ax * ax))
    return jnp.where(x < 0.0, -y, y)


def _cdf_loss_kernel(w_ref, mu_ref, c_ref, gt_ref, pr_ref, mk_ref, out_ref, *,
                     block_rows, total_rows, mask_tail):
    gt = gt_ref[...]            # (block_rows, lanes) f32
    pr = pr_ref[...]
    mk = mk_ref[...]

    w_all = w_ref[...]          # (NC, lanes): 0.5 * weight for GMM batch (lane % B)
    mu_all = mu_ref[...]        # (NC, lanes): component means per lane
    c_all = c_ref[...]          # (NC, lanes): 1 / (sd * sqrt(2)) per lane

    nc = w_all.shape[0]
    # acc accumulates cdf_gt - cdf_pred directly (the `1 +` terms cancel).
    acc = jnp.zeros_like(gt)
    for n in range(nc):         # small NC, statically unrolled
        mu = mu_all[n:n + 1, :]
        c = c_all[n:n + 1, :]
        w = w_all[n:n + 1, :]
        acc = acc + w * (_erf_approx((gt - mu) * c) - _erf_approx((pr - mu) * c))

    # TODO(synk): abs() dropped from the per-element path — exact only for
    # non-negative (e.g. 0/1) masks; a signed mask would need |mask| here.
    val = mk * (acc * acc)

    if mask_tail:
        # Ragged last block: rows beyond `total_rows` hold undefined VMEM data;
        # select (not multiply) them away so NaN/Inf garbage cannot propagate.
        row = (lax.broadcasted_iota(jnp.int32, val.shape, 0)
               + pl.program_id(0) * block_rows)
        valid = row < total_rows
        val = jnp.where(valid, val, 0.0)
        mk = jnp.where(valid, mk, 0.0)

    num_row = jnp.sum(val, axis=0, keepdims=True)   # (1, lanes)
    den_row = jnp.sum(mk, axis=0, keepdims=True)    # (1, lanes)
    out_ref[:, 0:1, :] = num_row[None, :, :]        # packed (1, 2, lanes) output block
    out_ref[:, 1:2, :] = den_row[None, :, :]


def cdf_norm_loss(range_gt, range_pred, mixtures, mask, *, block_rows=2048):
    """range_gt / range_pred / mask: (B, 1, H, W); mixtures: (B, 3, NC)."""
    B, C, H, W = range_gt.shape
    assert C == 1, "CDFNornLoss produces single-channel CDF images"
    assert range_pred.shape == (B, C, H, W)
    assert mask.shape == (B, C, H, W)
    NC = mixtures.shape[2]
    assert mixtures.shape == (B, 3, NC)
    # TODO(synk): a mask with >1 channels (norm over a real channel axis) is not handled.

    # Lane width: multiple of 128 and of B so (flat NCHW index % B) == (lane % B).
    lanes = 128 * (B // math.gcd(B, 128))
    T = B * C * H * W
    rows = _cdiv(T, lanes)

    def to_f32(x):
        return x if x.dtype == jnp.float32 else x.astype(jnp.float32)
    # TODO(synk): bf16 inputs could be streamed natively and upcast in-kernel to
    # halve input DMA bytes (matters mostly on v5e); kept as f32 for robustness.
    gt_f = to_f32(range_gt).reshape(-1)
    pr_f = to_f32(range_pred).reshape(-1)
    mk_f = to_f32(mask).reshape(-1)

    lane_pad = rows * lanes - T
    if lane_pad:
        # Zero padding: gt == pred == 0 -> zero numerator; mask == 0 -> zero denominator.
        gt_f = jnp.pad(gt_f, (0, lane_pad))
        pr_f = jnp.pad(pr_f, (0, lane_pad))
        mk_f = jnp.pad(mk_f, (0, lane_pad))

    gt2 = gt_f.reshape(rows, lanes)   # free reshape (contiguous)
    pr2 = pr_f.reshape(rows, lanes)
    mk2 = mk_f.reshape(rows, lanes)

    # Per-lane GMM parameter tables (NC, lanes); 0.5 CDF factor folded into weights.
    lane_b = jnp.arange(lanes) % B
    w_lane = (0.5 * mixtures[:, 0, :].astype(jnp.float32))[lane_b].T           # (NC, lanes)
    mu_lane = mixtures[:, 1, :].astype(jnp.float32)[lane_b].T                  # (NC, lanes)
    c_lane = (1.0 / (mixtures[:, 2, :].astype(jnp.float32) * math.sqrt(2.0)))[lane_b].T

    # Block sizing: VMEM-aware (3 f32 inputs double-buffered <= ~24 MiB), rows a
    # multiple of 8 (or the full extent), and >= 2 grid steps when there is
    # enough work so both v7x TensorCores get blocks on the "parallel" axis.
    vmem_input_budget = 24 * 1024 * 1024
    max_rows_vmem = max(8, (vmem_input_budget // (3 * 2 * lanes * 4)) // 8 * 8)
    target = max(8, min(block_rows, max_rows_vmem))
    if rows < 16:
        block_r = rows                  # block == full extent (any row count is legal)
    else:
        block_r = min(target, _round_up(_cdiv(rows, 2), 8))
    nblocks = _cdiv(rows, block_r)
    mask_tail = (nblocks * block_r != rows)   # ragged last block handled in-kernel

    kernel = functools.partial(_cdf_loss_kernel, block_rows=block_r,
                               total_rows=rows, mask_tail=mask_tail)

    tile_spec = pl.BlockSpec((block_r, lanes), lambda i: (i, 0))
    param_spec = pl.BlockSpec((NC, lanes), lambda i: (0, 0))
    out_spec = pl.BlockSpec((1, 2, lanes), lambda i: (i, 0, 0))

    partial_sums = pl.pallas_call(
        kernel,
        out_shape=jax.ShapeDtypeStruct((nblocks, 2, lanes), jnp.float32),
        grid_spec=pltpu.PrefetchScalarGridSpec(
            num_scalar_prefetch=0,
            grid=(nblocks,),
            in_specs=[param_spec, param_spec, param_spec,
                      tile_spec, tile_spec, tile_spec],
            out_specs=out_spec,
        ),
        compiler_params=pltpu.CompilerParams(
            dimension_semantics=("parallel",),
            vmem_limit_bytes=32 * 1024 * 1024,
        ),
    )(w_lane, mu_lane, c_lane, gt2, pr2, mk2)

    num = jnp.sum(partial_sums[:, 0, :])
    den = jnp.sum(partial_sums[:, 1, :])
    return 0.5 * num / den            # the /2 of the loss, applied once to the scalar


# ----------------------- pure-JAX reference (faithful port) -----------------------

def _build_gmm_cdf_ref(gmm, x):
    weights = gmm[:, 0, :]
    means = gmm[:, 1, :]
    stds = gmm[:, 2, :]
    B = means.shape[0]
    H, W = x.shape[2], x.shape[3]
    xr = x.reshape(-1, B, 1)
    comp = jax.scipy.stats.norm.cdf(xr, loc=means, scale=stds)   # (M, B, NC)
    gmm_cdf = jnp.sum(comp * weights, axis=-1)                   # (M, B)
    return gmm_cdf.reshape(B, 1, H, W)


def cdf_norm_loss_ref(range_gt, range_pred, mixtures, mask):
    gt_n = _build_gmm_cdf_ref(mixtures, range_gt)
    pr_n = _build_gmm_cdf_ref(mixtures, range_pred)
    per = mask * jnp.square(gt_n - pr_n) / 2.0
    loss = jnp.sum(jnp.sqrt(jnp.sum(per * per, axis=1)))   # torch.linalg.norm(dim=1)
    return loss / jnp.sum(mask)


if __name__ == "__main__":
    key = jax.random.PRNGKey(0)
    k1, k2, k3, k4, k5, k6 = jax.random.split(key, 6)

    B, H, W, NC = 2, 16, 16, 4
    range_gt = jax.random.normal(k1, (B, 1, H, W), dtype=jnp.float32)
    range_pred = range_gt + 0.3 * jax.random.normal(k2, (B, 1, H, W), dtype=jnp.float32)

    weights = jax.nn.softmax(jax.random.normal(k3, (B, NC)), axis=-1)
    means = jax.random.normal(k4, (B, NC))
    stds = 0.5 + jax.random.uniform(k5, (B, NC))
    mixtures = jnp.stack([weights, means, stds], axis=1).astype(jnp.float32)  # (B, 3, NC)

    mask = (jax.random.uniform(k6, (B, 1, H, W)) > 0.3).astype(jnp.float32)

    loss = cdf_norm_loss(range_gt, range_pred, mixtures, mask)
    loss = jax.block_until_ready(loss)

    ref = cdf_norm_loss_ref(range_gt, range_pred, mixtures, mask)
    assert jnp.allclose(loss, ref, rtol=1e-5, atol=1e-5), (loss, ref)

    print("KERNEL_OK")
</pallas_src>

<mosaic_0001>
module attributes {stable_mosaic.version = 11 : i64} {
  func.func @_cdf_loss_kernel(%arg0: i32, %arg1: memref<4x128xf32, #tpu.memory_space<vmem>>, %arg2: memref<4x128xf32, #tpu.memory_space<vmem>>, %arg3: memref<4x128xf32, #tpu.memory_space<vmem>>, %arg4: memref<4x128xf32, #tpu.memory_space<vmem>>, %arg5: memref<4x128xf32, #tpu.memory_space<vmem>>, %arg6: memref<4x128xf32, #tpu.memory_space<vmem>>, %arg7: memref<1x2x128xf32, #tpu.memory_space<vmem>>) attributes {dimension_semantics = [#tpu.dimension_semantics<parallel>], iteration_bounds = array<i64: 1>, scalar_prefetch = 0 : i64, scratch_operands = 0 : i64, tpu.core_type = #tpu.core_type<tc>, window_params = [{pipeline_mode = #tpu.pipeline_mode<synchronous>, transform_indices = @transform_0, window_bounds = array<i64: 4, 128>}, {pipeline_mode = #tpu.pipeline_mode<synchronous>, transform_indices = @transform_1, window_bounds = array<i64: 4, 128>}, {pipeline_mode = #tpu.pipeline_mode<synchronous>, transform_indices = @transform_2, window_bounds = array<i64: 4, 128>}, {transform_indices = @transform_3, window_bounds = array<i64: 4, 128>}, {transform_indices = @transform_4, window_bounds = array<i64: 4, 128>}, {transform_indices = @transform_5, window_bounds = array<i64: 4, 128>}, {transform_indices = @transform_6, window_bounds = array<i64: 1, 2, 128>}]} {
    %c0 = arith.constant 0 : index
    %c0_0 = arith.constant 0 : index
    %0 = vector.load %arg4[%c0, %c0_0] : memref<4x128xf32, #tpu.memory_space<vmem>>, vector<4x128xf32>
    %c0_1 = arith.constant 0 : index
    %c0_2 = arith.constant 0 : index
    %1 = vector.load %arg5[%c0_1, %c0_2] : memref<4x128xf32, #tpu.memory_space<vmem>>, vector<4x128xf32>
    %c0_3 = arith.constant 0 : index
    %c0_4 = arith.constant 0 : index
    %2 = vector.load %arg6[%c0_3, %c0_4] : memref<4x128xf32, #tpu.memory_space<vmem>>, vector<4x128xf32>
    %c0_5 = arith.constant 0 : index
    %c0_6 = arith.constant 0 : index
    %3 = vector.load %arg1[%c0_5, %c0_6] : memref<4x128xf32, #tpu.memory_space<vmem>>, vector<4x128xf32>
    %c0_7 = arith.constant 0 : index
    %c0_8 = arith.constant 0 : index
    %4 = vector.load %arg2[%c0_7, %c0_8] : memref<4x128xf32, #tpu.memory_space<vmem>>, vector<4x128xf32>
    %c0_9 = arith.constant 0 : index
    %c0_10 = arith.constant 0 : index
    %5 = vector.load %arg3[%c0_9, %c0_10] : memref<4x128xf32, #tpu.memory_space<vmem>>, vector<4x128xf32>
    %cst = arith.constant 0.000000e+00 : f32
    %6 = vector.broadcast %cst : f32 to vector<4x128xf32>
    %7 = vector.extract_strided_slice %4 {offsets = [0, 0], sizes = [1, 128], strides = [1, 1]} : vector<4x128xf32> to vector<1x128xf32>
    %8 = vector.extract_strided_slice %5 {offsets = [0, 0], sizes = [1, 128], strides = [1, 1]} : vector<4x128xf32> to vector<1x128xf32>
    %9 = vector.extract_strided_slice %3 {offsets = [0, 0], sizes = [1, 128], strides = [1, 1]} : vector<4x128xf32> to vector<1x128xf32>
    %10 = vector.broadcast %7 : vector<1x128xf32> to vector<4x128xf32>
    %11 = arith.subf %0, %10 : vector<4x128xf32>
    %12 = vector.broadcast %8 : vector<1x128xf32> to vector<4x128xf32>
    %13 = arith.mulf %11, %12 : vector<4x128xf32>
    %14 = math.absf %13 : vector<4x128xf32>
    %cst_11 = arith.constant 0.327591091 : f32
    %15 = vector.broadcast %cst_11 : f32 to vector<4x128xf32>
    %16 = arith.mulf %15, %14 : vector<4x128xf32>
    %cst_12 = arith.constant 1.000000e+00 : f32
    %17 = vector.broadcast %cst_12 : f32 to vector<4x128xf32>
    %18 = arith.addf %17, %16 : vector<4x128xf32>
    %19 = tpu.reciprocal %18 {approx = true} : vector<4x128xf32> -> vector<4x128xf32>
    %20 = arith.mulf %18, %19 : vector<4x128xf32>
    %cst_13 = arith.constant 2.000000e+00 : f32
    %21 = vector.broadcast %cst_13 : f32 to vector<4x128xf32>
    %22 = arith.subf %21, %20 : vector<4x128xf32>
    %23 = arith.mulf %19, %22 : vector<4x128xf32>
    %cst_14 = arith.constant 1.06140542 : f32
    %24 = vector.broadcast %cst_14 : f32 to vector<4x128xf32>
    %25 = arith.mulf %24, %23 : vector<4x128xf32>
    %cst_15 = arith.constant -1.45315206 : f32
    %26 = vector.broadcast %cst_15 : f32 to vector<4x128xf32>
    %27 = arith.addf %25, %26 : vector<4x128xf32>
    %28 = arith.mulf %27, %23 : vector<4x128xf32>
    %cst_16 = arith.constant 1.42141378 : f32
    %29 = vector.broadcast %cst_16 : f32 to vector<4x128xf32>
    %30 = arith.addf %28, %29 : vector<4x128xf32>
    %31 = arith.mulf %30, %23 : vector<4x128xf32>
    %cst_17 = arith.constant -0.284496725 : f32
    %32 = vector.broadcast %cst_17 : f32 to vector<4x128xf32>
    %33 = arith.addf %31, %32 : vector<4x128xf32>
    %34 = arith.mulf %33, %23 : vector<4x128xf32>
    %cst_18 = arith.constant 0.254829586 : f32
    %35 = vector.broadcast %cst_18 : f32 to vector<4x128xf32>
    %36 = arith.addf %34, %35 : vector<4x128xf32>
    %37 = arith.mulf %36, %23 : vector<4x128xf32>
    %38 = arith.mulf %14, %14 : vector<4x128xf32>
    %cst_19 = arith.constant 0.000000e+00 : f32
    %39 = vector.broadcast %cst_19 : f32 to vector<4x128xf32>
    %40 = arith.subf %39, %38 : vector<4x128xf32>
    %41 = math.exp %40 : vector<4x128xf32>
    %42 = arith.mulf %37, %41 : vector<4x128xf32>
    %cst_20 = arith.constant 1.000000e+00 : f32
    %43 = vector.broadcast %cst_20 : f32 to vector<4x128xf32>
    %44 = arith.subf %43, %42 : vector<4x128xf32>
    %cst_21 = arith.constant 0.000000e+00 : f32
    %45 = vector.broadcast %cst_21 : f32 to vector<4x128xf32>
    %46 = arith.cmpf olt, %13, %45 : vector<4x128xf32>
    %cst_22 = arith.constant 0.000000e+00 : f32
    %47 = vector.broadcast %cst_22 : f32 to vector<4x128xf32>
    %48 = arith.subf %47, %44 : vector<4x128xf32>
    %49 = arith.select %46, %48, %44 : vector<4x128xi1>, vector<4x128xf32>
    %50 = vector.broadcast %7 : vector<1x128xf32> to vector<4x128xf32>
    %51 = arith.subf %1, %50 : vector<4x128xf32>
    %52 = vector.broadcast %8 : vector<1x128xf32> to vector<4x128xf32>
    %53 = arith.mulf %51, %52 : vector<4x128xf32>
    %54 = math.absf %53 : vector<4x128xf32>
    %cst_23 = arith.constant 0.327591091 : f32
    %55 = vector.broadcast %cst_23 : f32 to vector<4x128xf32>
    %56 = arith.mulf %55, %54 : vector<4x128xf32>
    %cst_24 = arith.constant 1.000000e+00 : f32
    %57 = vector.broadcast %cst_24 : f32 to vector<4x128xf32>
    %58 = arith.addf %57, %56 : vector<4x128xf32>
    %59 = tpu.reciprocal %58 {approx = true} : vector<4x128xf32> -> vector<4x128xf32>
    %60 = arith.mulf %58, %59 : vector<4x128xf32>
    %cst_25 = arith.constant 2.000000e+00 : f32
    %61 = vector.broadcast %cst_25 : f32 to vector<4x128xf32>
    %62 = arith.subf %61, %60 : vector<4x128xf32>
    %63 = arith.mulf %59, %62 : vector<4x128xf32>
    %cst_26 = arith.constant 1.06140542 : f32
    %64 = vector.broadcast %cst_26 : f32 to vector<4x128xf32>
    %65 = arith.mulf %64, %63 : vector<4x128xf32>
    %cst_27 = arith.constant -1.45315206 : f32
    %66 = vector.broadcast %cst_27 : f32 to vector<4x128xf32>
    %67 = arith.addf %65, %66 : vector<4x128xf32>
    %68 = arith.mulf %67, %63 : vector<4x128xf32>
    %cst_28 = arith.constant 1.42141378 : f32
    %69 = vector.broadcast %cst_28 : f32 to vector<4x128xf32>
    %70 = arith.addf %68, %69 : vector<4x128xf32>
    %71 = arith.mulf %70, %63 : vector<4x128xf32>
    %cst_29 = arith.constant -0.284496725 : f32
    %72 = vector.broadcast %cst_29 : f32 to vector<4x128xf32>
    %73 = arith.addf %71, %72 : vector<4x128xf32>
    %74 = arith.mulf %73, %63 : vector<4x128xf32>
    %cst_30 = arith.constant 0.254829586 : f32
    %75 = vector.broadcast %cst_30 : f32 to vector<4x128xf32>
    %76 = arith.addf %74, %75 : vector<4x128xf32>
    %77 = arith.mulf %76, %63 : vector<4x128xf32>
    %78 = arith.mulf %54, %54 : vector<4x128xf32>
    %cst_31 = arith.constant 0.000000e+00 : f32
    %79 = vector.broadcast %cst_31 : f32 to vector<4x128xf32>
    %80 = arith.subf %79, %78 : vector<4x128xf32>
    %81 = math.exp %80 : vector<4x128xf32>
    %82 = arith.mulf %77, %81 : vector<4x128xf32>
    %cst_32 = arith.constant 1.000000e+00 : f32
    %83 = vector.broadcast %cst_32 : f32 to vector<4x128xf32>
    %84 = arith.subf %83, %82 : vector<4x128xf32>
    %cst_33 = arith.constant 0.000000e+00 : f32
    %85 = vector.broadcast %cst_33 : f32 to vector<4x128xf32>
    %86 = arith.cmpf olt, %53, %85 : vector<4x128xf32>
    %cst_34 = arith.constant 0.000000e+00 : f32
    %87 = vector.broadcast %cst_34 : f32 to vector<4x128xf32>
    %88 = arith.subf %87, %84 : vector<4x128xf32>
    %89 = arith.select %86, %88, %84 : vector<4x128xi1>, vector<4x128xf32>
    %90 = arith.subf %49, %89 : vector<4x128xf32>
    %91 = vector.broadcast %9 : vector<1x128xf32> to vector<4x128xf32>
    %92 = arith.mulf %91, %90 : vector<4x128xf32>
    %93 = arith.addf %6, %92 : vector<4x128xf32>
    %94 = vector.extract_strided_slice %4 {offsets = [1, 0], sizes = [1, 128], strides = [1, 1]} : vector<4x128xf32> to vector<1x128xf32>
    %95 = vector.extract_strided_slice %5 {offsets = [1, 0], sizes = [1, 128], strides = [1, 1]} : vector<4x128xf32> to vector<1x128xf32>
    %96 = vector.extract_strided_slice %3 {offsets = [1, 0], sizes = [1, 128], strides = [1, 1]} : vector<4x128xf32> to vector<1x128xf32>
    %97 = vector.broadcast %94 : vector<1x128xf32> to vector<4x128xf32>
    %98 = arith.subf %0, %97 : vector<4x128xf32>
    %99 = vector.broadcast %95 : vector<1x128xf32> to vector<4x128xf32>
    %100 = arith.mulf %98, %99 : vector<4x128xf32>
    %101 = math.absf %100 : vector<4x128xf32>
    %cst_35 = arith.constant 0.327591091 : f32
    %102 = vector.broadcast %cst_35 : f32 to vector<4x128xf32>
    %103 = arith.mulf %102, %101 : vector<4x128xf32>
    %cst_36 = arith.constant 1.000000e+00 : f32
    %104 = vector.broadcast %cst_36 : f32 to vector<4x128xf32>
    %105 = arith.addf %104, %103 : vector<4x128xf32>
    %106 = tpu.reciprocal %105 {approx = true} : vector<4x128xf32> -> vector<4x128xf32>
    %107 = arith.mulf %105, %106 : vector<4x128xf32>
    %cst_37 = arith.constant 2.000000e+00 : f32
    %108 = vector.broadcast %cst_37 : f32 to vector<4x128xf32>
    %109 = arith.subf %108, %107 : vector<4x128xf32>
    %110 = arith.mulf %106, %109 : vector<4x128xf32>
    %cst_38 = arith.constant 1.06140542 : f32
    %111 = vector.broadcast %cst_38 : f32 to vector<4x128xf32>
    %112 = arith.mulf %111, %110 : vector<4x128xf32>
    %cst_39 = arith.constant -1.45315206 : f32
    %113 = vector.broadcast %cst_39 : f32 to vector<4x128xf32>
    %114 = arith.addf %112, %113 : vector<4x128xf32>
    %115 = arith.mulf %114, %110 : vector<4x128xf32>
    %cst_40 = arith.constant 1.42141378 : f32
    %116 = vector.broadcast %cst_40 : f32 to vector<4x128xf32>
    %117 = arith.addf %115, %116 : vector<4x128xf32>
    %118 = arith.mulf %117, %110 : vector<4x128xf32>
    %cst_41 = arith.constant -0.284496725 : f32
    %119 = vector.broadcast %cst_41 : f32 to vector<4x128xf32>
    %120 = arith.addf %118, %119 : vector<4x128xf32>
    %121 = arith.mulf %120, %110 : vector<4x128xf32>
    %cst_42 = arith.constant 0.254829586 : f32
    %122 = vector.broadcast %cst_42 : f32 to vector<4x128xf32>
    %123 = arith.addf %121, %122 : vector<4x128xf32>
    %124 = arith.mulf %123, %110 : vector<4x128xf32>
    %125 = arith.mulf %101, %101 : vector<4x128xf32>
    %cst_43 = arith.constant 0.000000e+00 : f32
    %126 = vector.broadcast %cst_43 : f32 to vector<4x128xf32>
    %127 = arith.subf %126, %125 : vector<4x128xf32>
    %128 = math.exp %127 : vector<4x128xf32>
    %129 = arith.mulf %124, %128 : vector<4x128xf32>
    %cst_44 = arith.constant 1.000000e+00 : f32
    %130 = vector.broadcast %cst_44 : f32 to vector<4x128xf32>
    %131 = arith.subf %130, %129 : vector<4x128xf32>
    %cst_45 = arith.constant 0.000000e+00 : f32
    %132 = vector.broadcast %cst_45 : f32 to vector<4x128xf32>
    %133 = arith.cmpf olt, %100, %132 : vector<4x128xf32>
    %cst_46 = arith.constant 0.000000e+00 : f32
    %134 = vector.broadcast %cst_46 : f32 to vector<4x128xf32>
    %135 = arith.subf %134, %131 : vector<4x128xf32>
    %136 = arith.select %133, %135, %131 : vector<4x128xi1>, vector<4x128xf32>
    %137 = vector.broadcast %94 : vector<1x128xf32> to vector<4x128xf32>
    %138 = arith.subf %1, %137 : vector<4x128xf32>
    %139 = vector.broadcast %95 : vector<1x128xf32> to vector<4x128xf32>
    %140 = arith.mulf %138, %139 : vector<4x128xf32>
    %141 = math.absf %140 : vector<4x128xf32>
    %cst_47 = arith.constant 0.327591091 : f32
    %142 = vector.broadcast %cst_47 : f32 to vector<4x128xf32>
    %143 = arith.mulf %142, %141 : vector<4x128xf32>
    %cst_48 = arith.constant 1.000000e+00 : f32
    %144 = vector.broadcast %cst_48 : f32 to vector<4x128xf32>
    %145 = arith.addf %144, %143 : vector<4x128xf32>
    %146 = tpu.reciprocal %145 {approx = true} : vector<4x128xf32> -> vector<4x128xf32>
    %147 = arith.mulf %145, %146 : vector<4x128xf32>
    %cst_49 = arith.constant 2.000000e+00 : f32
    %148 = vector.broadcast %cst_49 : f32 to vector<4x128xf32>
    %149 = arith.subf %148, %147 : vector<4x128xf32>
    %150 = arith.mulf %146, %149 : vector<4x128xf32>
    %cst_50 = arith.constant 1.06140542 : f32
    %151 = vector.broadcast %cst_50 : f32 to vector<4x128xf32>
    %152 = arith.mulf %151, %150 : vector<4x128xf32>
    %cst_51 = arith.constant -1.45315206 : f32
    %153 = vector.broadcast %cst_51 : f32 to vector<4x128xf32>
    %154 = arith.addf %152, %153 : vector<4x128xf32>
    %155 = arith.mulf %154, %150 : vector<4x128xf32>
    %cst_52 = arith.constant 1.42141378 : f32
    %156 = vector.broadcast %cst_52 : f32 to vector<4x128xf32>
    %157 = arith.addf %155, %156 : vector<4x128xf32>
    %158 = arith.mulf %157, %150 : vector<4x128xf32>
    %cst_53 = arith.constant -0.284496725 : f32
    %159 = vector.broadcast %cst_53 : f32 to vector<4x128xf32>
    %160 = arith.addf %158, %159 : vector<4x128xf32>
    %161 = arith.mulf %160, %150 : vector<4x128xf32>
    %cst_54 = arith.constant 0.254829586 : f32
    %162 = vector.broadcast %cst_54 : f32 to vector<4x128xf32>
    %163 = arith.addf %161, %162 : vector<4x128xf32>
    %164 = arith.mulf %163, %150 : vector<4x128xf32>
    %165 = arith.mulf %141, %141 : vector<4x128xf32>
    %cst_55 = arith.constant 0.000000e+00 : f32
    %166 = vector.broadcast %cst_55 : f32 to vector<4x128xf32>
    %167 = arith.subf %166, %165 : vector<4x128xf32>
    %168 = math.exp %167 : vector<4x128xf32>
    %169 = arith.mulf %164, %168 : vector<4x128xf32>
    %cst_56 = arith.constant 1.000000e+00 : f32
    %170 = vector.broadcast %cst_56 : f32 to vector<4x128xf32>
    %171 = arith.subf %170, %169 : vector<4x128xf32>
    %cst_57 = arith.constant 0.000000e+00 : f32
    %172 = vector.broadcast %cst_57 : f32 to vector<4x128xf32>
    %173 = arith.cmpf olt, %140, %172 : vector<4x128xf32>
    %cst_58 = arith.constant 0.000000e+00 : f32
    %174 = vector.broadcast %cst_58 : f32 to vector<4x128xf32>
    %175 = arith.subf %174, %171 : vector<4x128xf32>
    %176 = arith.select %173, %175, %171 : vector<4x128xi1>, vector<4x128xf32>
    %177 = arith.subf %136, %176 : vector<4x128xf32>
    %178 = vector.broadcast %96 : vector<1x128xf32> to vector<4x128xf32>
    %179 = arith.mulf %178, %177 : vector<4x128xf32>
    %180 = arith.addf %93, %179 : vector<4x128xf32>
    %181 = vector.extract_strided_slice %4 {offsets = [2, 0], sizes = [1, 128], strides = [1, 1]} : vector<4x128xf32> to vector<1x128xf32>
    %182 = vector.extract_strided_slice %5 {offsets = [2, 0], sizes = [1, 128], strides = [1, 1]} : vector<4x128xf32> to vector<1x128xf32>
    %183 = vector.extract_strided_slice %3 {offsets = [2, 0], sizes = [1, 128], strides = [1, 1]} : vector<4x128xf32> to vector<1x128xf32>
    %184 = vector.broadcast %181 : vector<1x128xf32> to vector<4x128xf32>
    %185 = arith.subf %0, %184 : vector<4x128xf32>
    %186 = vector.broadcast %182 : vector<1x128xf32> to vector<4x128xf32>
    %187 = arith.mulf %185, %186 : vector<4x128xf32>
    %188 = math.absf %187 : vector<4x128xf32>
    %cst_59 = arith.constant 0.327591091 : f32
    %189 = vector.broadcast %cst_59 : f32 to vector<4x128xf32>
    %190 = arith.mulf %189, %188 : vector<4x128xf32>
    %cst_60 = arith.constant 1.000000e+00 : f32
    %191 = vector.broadcast %cst_60 : f32 to vector<4x128xf32>
    %192 = arith.addf %191, %190 : vector<4x128xf32>
    %193 = tpu.reciprocal %192 {approx = true} : vector<4x128xf32> -> vector<4x128xf32>
    %194 = arith.mulf %192, %193 : vector<4x128xf32>
    %cst_61 = arith.constant 2.000000e+00 : f32
    %195 = vector.broadcast %cst_61 : f32 to vector<4x128xf32>
    %196 = arith.subf %195, %194 : vector<4x128xf32>
    %197 = arith.mulf %193, %196 : vector<4x128xf32>
    %cst_62 = arith.constant 1.06140542 : f32
    %198 = vector.broadcast %cst_62 : f32 to vector<4x128xf32>
    %199 = arith.mulf %198, %197 : vector<4x128xf32>
    %cst_63 = arith.constant -1.45315206 : f32
    %200 = vector.broadcast %cst_63 : f32 to vector<4x128xf32>
    %201 = arith.addf %199, %200 : vector<4x128xf32>
    %202 = arith.mulf %201, %197 : vector<4x128xf32>
    %cst_64 = arith.constant 1.42141378 : f32
    %203 = vector.broadcast %cst_64 : f32 to vector<4x128xf32>
    %204 = arith.addf %202, %203 : vector<4x128xf32>
    %205 = arith.mulf %204, %197 : vector<4x128xf32>
    %cst_65 = arith.constant -0.284496725 : f32
    %206 = vector.broadcast %cst_65 : f32 to vector<4x128xf32>
    %207 = arith.addf %205, %206 : vector<4x128xf32>
    %208 = arith.mulf %207, %197 : vector<4x128xf32>
    %cst_66 = arith.constant 0.254829586 : f32
    %209 = vector.broadcast %cst_66 : f32 to vector<4x128xf32>
    %210 = arith.addf %208, %209 : vector<4x128xf32>
    %211 = arith.mulf %210, %197 : vector<4x128xf32>
    %212 = arith.mulf %188, %188 : vector<4x128xf32>
    %cst_67 = arith.constant 0.000000e+00 : f32
    %213 = vector.broadcast %cst_67 : f32 to vector<4x128xf32>
    %214 = arith.subf %213, %212 : vector<4x128xf32>
    %215 = math.exp %214 : vector<4x128xf32>
    %216 = arith.mulf %211, %215 : vector<4x128xf32>
    %cst_68 = arith.constant 1.000000e+00 : f32
    %217 = vector.broadcast %cst_68 : f32 to vector<4x128xf32>
    %218 = arith.subf %217, %216 : vector<4x128xf32>
    %cst_69 = arith.constant 0.000000e+00 : f32
    %219 = vector.broadcast %cst_69 : f32 to vector<4x128xf32>
    %220 = arith.cmpf olt, %187, %219 : vector<4x128xf32>
    %cst_70 = arith.constant 0.000000e+00 : f32
    %221 = vector.broadcast %cst_70 : f32 to vector<4x128xf32>
    %222 = arith.subf %221, %218 : vector<4x128xf32>
    %223 = arith.select %220, %222, %218 : vector<4x128xi1>, vector<4x128xf32>
    %224 = vector.broadcast %181 : vector<1x128xf32> to vector<4x128xf32>
    %225 = arith.subf %1, %224 : vector<4x128xf32>
    %226 = vector.broadcast %182 : vector<1x128xf32> to vector<4x128xf32>
    %227 = arith.mulf %225, %226 : vector<4x128xf32>
    %228 = math.absf %227 : vector<4x128xf32>
    %cst_71 = arith.constant 0.327591091 : f32
    %229 = vector.broadcast %cst_71 : f32 to vector<4x128xf32>
    %230 = arith.mulf %229, %228 : vector<4x128xf32>
    %cst_72 = arith.constant 1.000000e+00 : f32
    %231 = vector.broadcast %cst_72 : f32 to vector<4x128xf32>
    %232 = arith.addf %231, %230 : vector<4x128xf32>
    %233 = tpu.reciprocal %232 {approx = true} : vector<4x128xf32> -> vector<4x128xf32>
    %234 = arith.mulf %232, %233 : vector<4x128xf32>
    %cst_73 = arith.constant 2.000000e+00 : f32
    %235 = vector.broadcast %cst_73 : f32 to vector<4x128xf32>
    %236 = arith.subf %235, %234 : vector<4x128xf32>
    %237 = arith.mulf %233, %236 : vector<4x128xf32>
    %cst_74 = arith.constant 1.06140542 : f32
    %238 = vector.broadcast %cst_74 : f32 to vector<4x128xf32>
    %239 = arith.mulf %238, %237 : vector<4x128xf32>
    %cst_75 = arith.constant -1.45315206 : f32
    %240 = vector.broadcast %cst_75 : f32 to vector<4x128xf32>
    %241 = arith.addf %239, %240 : vector<4x128xf32>
    %242 = arith.mulf %241, %237 : vector<4x128xf32>
    %cst_76 = arith.constant 1.42141378 : f32
    %243 = vector.broadcast %cst_76 : f32 to vector<4x128xf32>
    %244 = arith.addf %242, %243 : vector<4x128xf32>
    %245 = arith.mulf %244, %237 : vector<4x128xf32>
    %cst_77 = arith.constant -0.284496725 : f32
    %246 = vector.broadcast %cst_77 : f32 to vector<4x128xf32>
    %247 = arith.addf %245, %246 : vector<4x128xf32>
    %248 = arith.mulf %247, %237 : vector<4x128xf32>
    %cst_78 = arith.constant 0.254829586 : f32
    %249 = vector.broadcast %cst_78 : f32 to vector<4x128xf32>
    %250 = arith.addf %248, %249 : vector<4x128xf32>
    %251 = arith.mulf %250, %237 : vector<4x128xf32>
    %252 = arith.mulf %228, %228 : vector<4x128xf32>
    %cst_79 = arith.constant 0.000000e+00 : f32
    %253 = vector.broadcast %cst_79 : f32 to vector<4x128xf32>
    %254 = arith.subf %253, %252 : vector<4x128xf32>
    %255 = math.exp %254 : vector<4x128xf32>
    %256 = arith.mulf %251, %255 : vector<4x128xf32>
    %cst_80 = arith.constant 1.000000e+00 : f32
    %257 = vector.broadcast %cst_80 : f32 to vector<4x128xf32>
    %258 = arith.subf %257, %256 : vector<4x128xf32>
    %cst_81 = arith.constant 0.000000e+00 : f32
    %259 = vector.broadcast %cst_81 : f32 to vector<4x128xf32>
    %260 = arith.cmpf olt, %227, %259 : vector<4x128xf32>
    %cst_82 = arith.constant 0.000000e+00 : f32
    %261 = vector.broadcast %cst_82 : f32 to vector<4x128xf32>
    %262 = arith.subf %261, %258 : vector<4x128xf32>
    %263 = arith.select %260, %262, %258 : vector<4x128xi1>, vector<4x128xf32>
    %264 = arith.subf %223, %263 : vector<4x128xf32>
    %265 = vector.broadcast %183 : vector<1x128xf32> to vector<4x128xf32>
    %266 = arith.mulf %265, %264 : vector<4x128xf32>
    %267 = arith.addf %180, %266 : vector<4x128xf32>
    %268 = vector.extract_strided_slice %4 {offsets = [3, 0], sizes = [1, 128], strides = [1, 1]} : vector<4x128xf32> to vector<1x128xf32>
    %269 = vector.extract_strided_slice %5 {offsets = [3, 0], sizes = [1, 128], strides = [1, 1]} : vector<4x128xf32> to vector<1x128xf32>
    %270 = vector.extract_strided_slice %3 {offsets = [3, 0], sizes = [1, 128], strides = [1, 1]} : vector<4x128xf32> to vector<1x128xf32>
    %271 = vector.broadcast %268 : vector<1x128xf32> to vector<4x128xf32>
    %272 = arith.subf %0, %271 : vector<4x128xf32>
    %273 = vector.broadcast %269 : vector<1x128xf32> to vector<4x128xf32>
    %274 = arith.mulf %272, %273 : vector<4x128xf32>
    %275 = math.absf %274 : vector<4x128xf32>
    %cst_83 = arith.constant 0.327591091 : f32
    %276 = vector.broadcast %cst_83 : f32 to vector<4x128xf32>
    %277 = arith.mulf %276, %275 : vector<4x128xf32>
    %cst_84 = arith.constant 1.000000e+00 : f32
    %278 = vector.broadcast %cst_84 : f32 to vector<4x128xf32>
    %279 = arith.addf %278, %277 : vector<4x128xf32>
    %280 = tpu.reciprocal %279 {approx = true} : vector<4x128xf32> -> vector<4x128xf32>
    %281 = arith.mulf %279, %280 : vector<4x128xf32>
    %cst_85 = arith.constant 2.000000e+00 : f32
    %282 = vector.broadcast %cst_85 : f32 to vector<4x128xf32>
    %283 = arith.subf %282, %281 : vector<4x128xf32>
    %284 = arith.mulf %280, %283 : vector<4x128xf32>
    %cst_86 = arith.constant 1.06140542 : f32
    %285 = vector.broadcast %cst_86 : f32 to vector<4x128xf32>
    %286 = arith.mulf %285, %284 : vector<4x128xf32>
    %cst_87 = arith.constant -1.45315206 : f32
    %287 = vector.broadcast %cst_87 : f32 to vector<4x128xf32>
    %288 = arith.addf %286, %287 : vector<4x128xf32>
    %289 = arith.mulf %288, %284 : vector<4x128xf32>
    %cst_88 = arith.constant 1.42141378 : f32
    %290 = vector.broadcast %cst_88 : f32 to vector<4x128xf32>
    %291 = arith.addf %289, %290 : vector<4x128xf32>
    %292 = arith.mulf %291, %284 : vector<4x128xf32>
    %cst_89 = arith.constant -0.284496725 : f32
    %293 = vector.broadcast %cst_89 : f32 to vector<4x128xf32>
    %294 = arith.addf %292, %293 : vector<4x128xf32>
    %295 = arith.mulf %294, %284 : vector<4x128xf32>
    %cst_90 = arith.constant 0.254829586 : f32
    %296 = vector.broadcast %cst_90 : f32 to vector<4x128xf32>
    %297 = arith.addf %295, %296 : vector<4x128xf32>
    %298 = arith.mulf %297, %284 : vector<4x128xf32>
    %299 = arith.mulf %275, %275 : vector<4x128xf32>
    %cst_91 = arith.constant 0.000000e+00 : f32
    %300 = vector.broadcast %cst_91 : f32 to vector<4x128xf32>
    %301 = arith.subf %300, %299 : vector<4x128xf32>
    %302 = math.exp %301 : vector<4x128xf32>
    %303 = arith.mulf %298, %302 : vector<4x128xf32>
    %cst_92 = arith.constant 1.000000e+00 : f32
    %304 = vector.broadcast %cst_92 : f32 to vector<4x128xf32>
    %305 = arith.subf %304, %303 : vector<4x128xf32>
    %cst_93 = arith.constant 0.000000e+00 : f32
    %306 = vector.broadcast %cst_93 : f32 to vector<4x128xf32>
    %307 = arith.cmpf olt, %274, %306 : vector<4x128xf32>
    %cst_94 = arith.constant 0.000000e+00 : f32
    %308 = vector.broadcast %cst_94 : f32 to vector<4x128xf32>
    %309 = arith.subf %308, %305 : vector<4x128xf32>
    %310 = arith.select %307, %309, %305 : vector<4x128xi1>, vector<4x128xf32>
    %311 = vector.broadcast %268 : vector<1x128xf32> to vector<4x128xf32>
    %312 = arith.subf %1, %311 : vector<4x128xf32>
    %313 = vector.broadcast %269 : vector<1x128xf32> to vector<4x128xf32>
    %314 = arith.mulf %312, %313 : vector<4x128xf32>
    %315 = math.absf %314 : vector<4x128xf32>
    %cst_95 = arith.constant 0.327591091 : f32
    %316 = vector.broadcast %cst_95 : f32 to vector<4x128xf32>
    %317 = arith.mulf %316, %315 : vector<4x128xf32>
    %cst_96 = arith.constant 1.000000e+00 : f32
    %318 = vector.broadcast %cst_96 : f32 to vector<4x128xf32>
    %319 = arith.addf %318, %317 : vector<4x128xf32>
    %320 = tpu.reciprocal %319 {approx = true} : vector<4x128xf32> -> vector<4x128xf32>
    %321 = arith.mulf %319, %320 : vector<4x128xf32>
    %cst_97 = arith.constant 2.000000e+00 : f32
    %322 = vector.broadcast %cst_97 : f32 to vector<4x128xf32>
    %323 = arith.subf %322, %321 : vector<4x128xf32>
    %324 = arith.mulf %320, %323 : vector<4x128xf32>
    %cst_98 = arith.constant 1.06140542 : f32
    %325 = vector.broadcast %cst_98 : f32 to vector<4x128xf32>
    %326 = arith.mulf %325, %324 : vector<4x128xf32>
    %cst_99 = arith.constant -1.45315206 : f32
    %327 = vector.broadcast %cst_99 : f32 to vector<4x128xf32>
    %328 = arith.addf %326, %327 : vector<4x128xf32>
    %329 = arith.mulf %328, %324 : vector<4x128xf32>
    %cst_100 = arith.constant 1.42141378 : f32
    %330 = vector.broadcast %cst_100 : f32 to vector<4x128xf32>
    %331 = arith.addf %329, %330 : vector<4x128xf32>
    %332 = arith.mulf %331, %324 : vector<4x128xf32>
    %cst_101 = arith.constant -0.284496725 : f32
    %333 = vector.broadcast %cst_101 : f32 to vector<4x128xf32>
    %334 = arith.addf %332, %333 : vector<4x128xf32>
    %335 = arith.mulf %334, %324 : vector<4x128xf32>
    %cst_102 = arith.constant 0.254829586 : f32
    %336 = vector.broadcast %cst_102 : f32 to vector<4x128xf32>
    %337 = arith.addf %335, %336 : vector<4x128xf32>
    %338 = arith.mulf %337, %324 : vector<4x128xf32>
    %339 = arith.mulf %315, %315 : vector<4x128xf32>
    %cst_103 = arith.constant 0.000000e+00 : f32
    %340 = vector.broadcast %cst_103 : f32 to vector<4x128xf32>
    %341 = arith.subf %340, %339 : vector<4x128xf32>
    %342 = math.exp %341 : vector<4x128xf32>
    %343 = arith.mulf %338, %342 : vector<4x128xf32>
    %cst_104 = arith.constant 1.000000e+00 : f32
    %344 = vector.broadcast %cst_104 : f32 to vector<4x128xf32>
    %345 = arith.subf %344, %343 : vector<4x128xf32>
    %cst_105 = arith.constant 0.000000e+00 : f32
    %346 = vector.broadcast %cst_105 : f32 to vector<4x128xf32>
    %347 = arith.cmpf olt, %314, %346 : vector<4x128xf32>
    %cst_106 = arith.constant 0.000000e+00 : f32
    %348 = vector.broadcast %cst_106 : f32 to vector<4x128xf32>
    %349 = arith.subf %348, %345 : vector<4x128xf32>
    %350 = arith.select %347, %349, %345 : vector<4x128xi1>, vector<4x128xf32>
    %351 = arith.subf %310, %350 : vector<4x128xf32>
    %352 = vector.broadcast %270 : vector<1x128xf32> to vector<4x128xf32>
    %353 = arith.mulf %352, %351 : vector<4x128xf32>
    %354 = arith.addf %267, %353 : vector<4x128xf32>
    %355 = arith.mulf %354, %354 : vector<4x128xf32>
    %356 = arith.mulf %2, %355 : vector<4x128xf32>
    %cst_107 = arith.constant dense<0.000000e+00> : vector<128xf32>
    %357 = vector.multi_reduction <add>, %356, %cst_107 [0] : vector<4x128xf32> to vector<128xf32>
    %358 = vector.shape_cast %357 : vector<128xf32> to vector<1x128xf32>
    %cst_108 = arith.constant dense<0.000000e+00> : vector<128xf32>
    %359 = vector.multi_reduction <add>, %2, %cst_108 [0] : vector<4x128xf32> to vector<128xf32>
    %360 = vector.shape_cast %359 : vector<128xf32> to vector<1x128xf32>
    %361 = vector.shape_cast %358 : vector<1x128xf32> to vector<1x1x128xf32>
    %c0_109 = arith.constant 0 : index
    %c0_110 = arith.constant 0 : index
    %c0_111 = arith.constant 0 : index
    %362 = vector.load %arg7[%c0_109, %c0_110, %c0_111] : memref<1x2x128xf32, #tpu.memory_space<vmem>>, vector<1x1x128xf32>
    tpu.vector_store %arg7[%c0_109, %c0_110, %c0_111], %361 {strides = array<i32>} : memref<1x2x128xf32, #tpu.memory_space<vmem>>, vector<1x1x128xf32>,
    %363 = vector.shape_cast %360 : vector<1x128xf32> to vector<1x1x128xf32>
    %c0_112 = arith.constant 0 : index
    %c1 = arith.constant 1 : index
    %c0_113 = arith.constant 0 : index
    %364 = vector.load %arg7[%c0_112, %c1, %c0_113] : memref<1x2x128xf32, #tpu.memory_space<vmem>>, vector<1x1x128xf32>
    tpu.vector_store %arg7[%c0_112, %c1, %c0_113], %363 {strides = array<i32>} : memref<1x2x128xf32, #tpu.memory_space<vmem>>, vector<1x1x128xf32>,
    return
  }
  func.func @transform_0(%arg0: i32) -> (i32, i32) {
    %c0_i32 = arith.constant 0 : i32
    %c0_i32_0 = arith.constant 0 : i32
    %c0_i32_1 = arith.constant 0 : i32
    return %c0_i32, %c0_i32_0 : i32, i32
  }
  func.func @transform_1(%arg0: i32) -> (i32, i32) {
    %c0_i32 = arith.constant 0 : i32
    %c0_i32_0 = arith.constant 0 : i32
    %c0_i32_1 = arith.constant 0 : i32
    return %c0_i32, %c0_i32_0 : i32, i32
  }
  func.func @transform_2(%arg0: i32) -> (i32, i32) {
    %c0_i32 = arith.constant 0 : i32
    %c0_i32_0 = arith.constant 0 : i32
    %c0_i32_1 = arith.constant 0 : i32
    return %c0_i32, %c0_i32_0 : i32, i32
  }
  func.func @transform_3(%arg0: i32) -> (i32, i32) {
    %c0_i32 = arith.constant 0 : i32
    %c0_i32_0 = arith.constant 0 : i32
    return %arg0, %c0_i32 : i32, i32
  }
  func.func @transform_4(%arg0: i32) -> (i32, i32) {
    %c0_i32 = arith.constant 0 : i32
    %c0_i32_0 = arith.constant 0 : i32
    return %arg0, %c0_i32 : i32, i32
  }
  func.func @transform_5(%arg0: i32) -> (i32, i32) {
    %c0_i32 = arith.constant 0 : i32
    %c0_i32_0 = arith.constant 0 : i32
    return %arg0, %c0_i32 : i32, i32
  }
  func.func @transform_6(%arg0: i32) -> (i32, i32, i32) {
    %c0_i32 = arith.constant 0 : i32
    %c0_i32_0 = arith.constant 0 : i32
    %c0_i32_1 = arith.constant 0 : i32
    return %arg0, %c0_i32, %c0_i32_0 : i32, i32, i32
  }
}

</mosaic_0001>

<llo_original>
// kernel: tpu_custom_call.1
$region0: #{tpu_custom_call.1}
  #allocation0 [shape = 'u32[]', space=smem, size = 0x4, offset = 0x4, fixed_abs, tag = 'smem constant byte address 0x4 - core index']
  #allocation1 [shape = 'u32[144,128]{1,0:T(1,128)}', space=vmem, size = 0x12000, scoped, tag = 'internal scratch']
  %s0 = inlined_call_operand.hbm [shape: f32[4,128], index: 0, kind: input, shape index: {}]
  %s1 = inlined_call_operand.hbm [shape: f32[4,128], index: 1, kind: input, shape index: {}]
  %s2 = inlined_call_operand.hbm [shape: f32[4,128], index: 2, kind: input, shape index: {}]
  %s3 = inlined_call_operand.vmem [shape: f32[4,128], index: 3, kind: input, shape index: {}]
  %s4 = inlined_call_operand.hbm [shape: f32[4,128], index: 4, kind: input, shape index: {}]
  %s5 = inlined_call_operand.vmem [shape: f32[4,128], index: 5, kind: input, shape index: {}]
  %s6 = inlined_call_operand.hbm [shape: f32[1,2,128], index: 6, kind: output, shape index: {}]
  %s7 = sld [smem:[#allocation0]]
  $region50: #{tpu_custom_call.1} parent=0
    _
  %s9 = ssub.s32 1, %s7
  %s10 = scalar_select 0, %s9, %s7
  $region1: #{tpu_custom_call.1} parent=0
    #allocation2 [shape = 'u8[2048]{0}', space=vmem, size = 0x800, scoped, tag = 'input window, operand 0, single buffered']
    #allocation3 [shape = 's32[1]{0}', space=sflag, size = 0x4, scoped, tag = 'scoped memory for tpu_custom_call.1']
    #allocation4 [shape = 's32[1]{0}', space=sflag, size = 0x4, scoped, tag = 'scoped memory for tpu_custom_call.1']
    #allocation5 [shape = 'u8[2048]{0}', space=vmem, size = 0x800, scoped, tag = 'input window, operand 1, single buffered']
    #allocation6 [shape = 's32[1]{0}', space=sflag, size = 0x4, scoped, tag = 'scoped memory for tpu_custom_call.1']
    #allocation7 [shape = 'u8[2048]{0}', space=vmem, size = 0x800, scoped, tag = 'input window, operand 2, single buffered']
    #allocation8 [shape = 'u8[2048]{0}', space=vmem, size = 0x800, scoped, tag = 'input window, operand 4, single buffered']
    #allocation9 [shape = 's32[1]{0}', space=sflag, size = 0x4, scoped, tag = 'scoped memory for tpu_custom_call.1']
    #allocation10 [shape = 'u8[1024]{0}', space=vmem, size = 0x400, scoped, tag = 'output window, operand 0, single buffered']
    %11 = vsyncpa [#allocation3], 0
    %12 = vsyncpa [#allocation6], 0
    %13 = vsyncpa [#allocation9], 0
    %14 = vsyncpa [#allocation4], 0
    // Predicated region
    $region2: #{tpu_custom_call.1} parent=1 // pred_check
      _
    $region3: #{tpu_custom_call.1} parent=1 // pred_check_branch
      %16 = sbr.rel (0) target = $region5
    $region4: #{tpu_custom_call.1} parent=1 // pred_region
      %s18 = ssub.s32 64, 64
      %19 = vsyncadd [#allocation3], %s18
      %s21 = sshll.u32 [#allocation2], 4
      %s22 = int_to_ptr.vmem [resolvable:$true] %s21
      %24 = dma.hbm_to_vmem [thread:$0]  %s0, 64, %s22, [#allocation3]
    $region5: #{tpu_custom_call.1} parent=1 // pred_fallthru
      _
    // Predicated region
    $region6: #{tpu_custom_call.1} parent=1 // pred_check
      _
    $region7: #{tpu_custom_call.1} parent=1 // pred_check_branch
      %26 = sbr.rel (0) target = $region9
    $region8: #{tpu_custom_call.1} parent=1 // pred_region
      %s28 = ssub.s32 64, 64
      %29 = vsyncadd [#allocation6], %s28
      %s31 = sshll.u32 [#allocation5], 4
      %s32 = int_to_ptr.vmem [resolvable:$true] %s31
      %34 = dma.hbm_to_vmem [thread:$0]  %s1, 64, %s32, [#allocation6]
    $region9: #{tpu_custom_call.1} parent=1 // pred_fallthru
      _
    // Predicated region
    $region10: #{tpu_custom_call.1} parent=1 // pred_check
      _
    $region11: #{tpu_custom_call.1} parent=1 // pred_check_branch
      %36 = sbr.rel (0) target = $region13
    $region12: #{tpu_custom_call.1} parent=1 // pred_region
      %s38 = ssub.s32 64, 64
      %39 = vsyncadd [#allocation6], %s38
      %s41 = sshll.u32 [#allocation7], 4
      %s42 = int_to_ptr.vmem [resolvable:$true] %s41
      %44 = dma.hbm_to_vmem [thread:$0]  %s2, 64, %s42, [#allocation6]
    $region13: #{tpu_custom_call.1} parent=1 // pred_fallthru
      _
    // Predicated region
    $region14: #{tpu_custom_call.1} parent=1 // pred_check
      _
    $region15: #{tpu_custom_call.1} parent=1 // pred_check_branch
      %46 = sbr.rel (0) target = $region17
    $region16: #{tpu_custom_call.1} parent=1 // pred_region
      _
    $region17: #{tpu_custom_call.1} parent=1 // pred_fallthru
      _
    // Predicated region
    $region18: #{tpu_custom_call.1} parent=1 // pred_check
      _
    $region19: #{tpu_custom_call.1} parent=1 // pred_check_branch
      %48 = sbr.rel (0) target = $region21
    $region20: #{tpu_custom_call.1} parent=1 // pred_region
      %s50 = ssub.s32 64, 64
      %51 = vsyncadd [#allocation9], %s50
      %s53 = sshll.u32 [#allocation8], 4
      %s54 = int_to_ptr.vmem [resolvable:$true] %s53
      %56 = dma.hbm_to_vmem [thread:$0]  %s4, 64, %s54, [#allocation9]
    $region21: #{tpu_custom_call.1} parent=1 // pred_fallthru
      _
    // Predicated region
    $region22: #{tpu_custom_call.1} parent=1 // pred_check
      _
    $region23: #{tpu_custom_call.1} parent=1 // pred_check_branch
      %58 = sbr.rel (0) target = $region25
    $region24: #{tpu_custom_call.1} parent=1 // pred_region
      _
    $region25: #{tpu_custom_call.1} parent=1 // pred_fallthru
      _
    // Predicated region
    $region26: #{tpu_custom_call.1} parent=1 // pred_check
      _
    $region27: #{tpu_custom_call.1} parent=1 // pred_check_branch
      %60 = sbr.rel (0) target = $region29
    $region28: #{tpu_custom_call.1} parent=1 // pred_region
      %61 = dma.done [#allocation3], 64
    $region29: #{tpu_custom_call.1} parent=1 // pred_fallthru
      _
    // Predicated region
    $region30: #{tpu_custom_call.1} parent=1 // pred_check
      _
    $region31: #{tpu_custom_call.1} parent=1 // pred_check_branch
      %63 = sbr.rel (0) target = $region33
    $region32: #{tpu_custom_call.1} parent=1 // pred_region
      %64 = dma.done [#allocation6], 64
    $region33: #{tpu_custom_call.1} parent=1 // pred_fallthru
      _
    // Predicated region
    $region34: #{tpu_custom_call.1} parent=1 // pred_check
      _
    $region35: #{tpu_custom_call.1} parent=1 // pred_check_branch
      %66 = sbr.rel (0) target = $region37
    $region36: #{tpu_custom_call.1} parent=1 // pred_region
      %67 = dma.done [#allocation6], 64
    $region37: #{tpu_custom_call.1} parent=1 // pred_fallthru
      _
    // Predicated region
    $region38: #{tpu_custom_call.1} parent=1 // pred_check
      _
    $region39: #{tpu_custom_call.1} parent=1 // pred_check_branch
      %69 = sbr.rel (0) target = $region41
    $region40: #{tpu_custom_call.1} parent=1 // pred_region
      %70 = dma.done [#allocation9], 64
    $region41: #{tpu_custom_call.1} parent=1 // pred_fallthru
      _
    %v71 = vld [vmem:[%s3] sm:$0xf]
    %v72 = vld [vmem:[#allocation8] sm:$0xf]
    %v73 = vld [vmem:[%s5] sm:$0xf]
    %v74 = vld [vmem:[#allocation2] sm:$0xf]
    %v75 = vld [vmem:[#allocation5] sm:$0xf]
    %v76 = vld [vmem:[#allocation7] sm:$0xf]
    %v77 = vlaneseq
    %v78 = vshrl.u32 %v77, 7
    %v79 = vsub.s32 0, %v78
    %v80 = vrot.slane %v75, %v79
    %v81 = vsub.f32 %v71, %v80
    %v82 = vlaneseq
    %v83 = vshrl.u32 %v82, 7
    %v84 = vsub.s32 0, %v83
    %v85 = vrot.slane %v76, %v84
    %v86 = vmul.f32 %v81, %v85
    %v87 = vand.u32 2147483647, %v86
    %v88 = vmul.f32 %v87, 0.3275911
    %v89 = vadd.f32 %v88, 1.0
    %v90 = vrcp.pop %v89
    %v91 = vmul.f32 %v89, %v90
    %v92 = vsub.f32 2.0, %v91
    %v93 = vmul.f32 %v90, %v92
    %v94 = vmul.f32 %v93, 1.0614054
    %v95 = vadd.f32 %v94, -1.4531521
    %v96 = vmul.f32 %v95, %v93
    %v97 = vadd.f32 %v96, 1.4214138
    %v98 = vmul.f32 %v97, %v93
    %v99 = vadd.f32 %v98, -0.28449672
    %v100 = vmul.f32 %v99, %v93
    %v101 = vadd.f32 %v100, 0.2548296
    %v102 = vmul.f32 %v101, %v93
    %v103 = vmul.f32 %v87, %v87
    %v104 = vsub.f32 0.0, %v103
    %v105 = vmul.f32 %v104, 1.442695
    %v106 = vpow.pop %v105
    %v107 = vmul.f32 %v102, %v106
    %v108 = vsub.f32 1.0, %v107
    %vm109 = vcmp.lt.f32.partialorder %v86, 0.0
    %v110 = vsub.f32 0.0, %v108
    %v111 = vsel %vm109, %v110, %v108
    %v112 = vsub.f32 %v72, %v80
    %v113 = vmul.f32 %v112, %v85
    %v114 = vand.u32 2147483647, %v113
    %v115 = vmul.f32 %v114, 0.3275911
    %v116 = vadd.f32 %v115, 1.0
    %v117 = vrcp.pop %v116
    %v118 = vmul.f32 %v116, %v117
    %v119 = vsub.f32 2.0, %v118
    %v120 = vmul.f32 %v117, %v119
    %v121 = vmul.f32 %v120, 1.0614054
    %v122 = vadd.f32 %v121, -1.4531521
    %v123 = vmul.f32 %v122, %v120
    %v124 = vadd.f32 %v123, 1.4214138
    %v125 = vmul.f32 %v124, %v120
    %v126 = vadd.f32 %v125, -0.28449672
    %v127 = vmul.f32 %v126, %v120
    %v128 = vadd.f32 %v127, 0.2548296
    %v129 = vmul.f32 %v128, %v120
    %v130 = vmul.f32 %v114, %v114
    %v131 = vsub.f32 0.0, %v130
    %v132 = vmul.f32 %v131, 1.442695
    %v133 = vpow.pop %v132
    %v134 = vmul.f32 %v129, %v133
    %v135 = vsub.f32 1.0, %v134
    %vm136 = vcmp.lt.f32.partialorder %v113, 0.0
    %v137 = vsub.f32 0.0, %v135
    %v138 = vsel %vm136, %v137, %v135
    %v139 = vsub.f32 %v111, %v138
    %v140 = vlaneseq
    %v141 = vshrl.u32 %v140, 7
    %v142 = vsub.s32 0, %v141
    %v143 = vrot.slane %v74, %v142
    %v144 = vmul.f32 %v143, %v139
    %v145 = vadd.f32 %v144, 0.0
    %v146 = vlaneseq
    %v147 = vshrl.u32 %v146, 7
    %v148 = vsub.s32 1, %v147
    %v149 = vrot.slane %v75, %v148
    %v150 = vsub.f32 %v71, %v149
    %v151 = vlaneseq
    %v152 = vshrl.u32 %v151, 7
    %v153 = vsub.s32 1, %v152
    %v154 = vrot.slane %v76, %v153
    %v155 = vmul.f32 %v150, %v154
    %v156 = vand.u32 2147483647, %v155
    %v157 = vmul.f32 %v156, 0.3275911
    %v158 = vadd.f32 %v157, 1.0
    %v159 = vrcp.pop %v158
    %v160 = vmul.f32 %v158, %v159
    %v161 = vsub.f32 2.0, %v160
    %v162 = vmul.f32 %v159, %v161
    %v163 = vmul.f32 %v162, 1.0614054
    %v164 = vadd.f32 %v163, -1.4531521
    %v165 = vmul.f32 %v164, %v162
    %v166 = vadd.f32 %v165, 1.4214138
    %v167 = vmul.f32 %v166, %v162
    %v168 = vadd.f32 %v167, -0.28449672
    %v169 = vmul.f32 %v168, %v162
    %v170 = vadd.f32 %v169, 0.2548296
    %v171 = vmul.f32 %v170, %v162
    %v172 = vmul.f32 %v156, %v156
    %v173 = vsub.f32 0.0, %v172
    %v174 = vmul.f32 %v173, 1.442695
    %v175 = vpow.pop %v174
    %v176 = vmul.f32 %v171, %v175
    %v177 = vsub.f32 1.0, %v176
    %vm178 = vcmp.lt.f32.partialorder %v155, 0.0
    %v179 = vsub.f32 0.0, %v177
    %v180 = vsel %vm178, %v179, %v177
    %v181 = vsub.f32 %v72, %v149
    %v182 = vmul.f32 %v181, %v154
    %v183 = vand.u32 2147483647, %v182
    %v184 = vmul.f32 %v183, 0.3275911
    %v185 = vadd.f32 %v184, 1.0
    %v186 = vrcp.pop %v185
    %v187 = vmul.f32 %v185, %v186
    %v188 = vsub.f32 2.0, %v187
    %v189 = vmul.f32 %v186, %v188
    %v190 = vmul.f32 %v189, 1.0614054
    %v191 = vadd.f32 %v190, -1.4531521
    %v192 = vmul.f32 %v191, %v189
    %v193 = vadd.f32 %v192, 1.4214138
    %v194 = vmul.f32 %v193, %v189
    %v195 = vadd.f32 %v194, -0.28449672
    %v196 = vmul.f32 %v195, %v189
    %v197 = vadd.f32 %v196, 0.2548296
    %v198 = vmul.f32 %v197, %v189
    %v199 = vmul.f32 %v183, %v183
    %v200 = vsub.f32 0.0, %v199
    %v201 = vmul.f32 %v200, 1.442695
    %v202 = vpow.pop %v201
    %v203 = vmul.f32 %v198, %v202
    %v204 = vsub.f32 1.0, %v203
    %vm205 = vcmp.lt.f32.partialorder %v182, 0.0
    %v206 = vsub.f32 0.0, %v204
    %v207 = vsel %vm205, %v206, %v204
    %v208 = vsub.f32 %v180, %v207
    %v209 = vlaneseq
    %v210 = vshrl.u32 %v209, 7
    %v211 = vsub.s32 1, %v210
    %v212 = vrot.slane %v74, %v211
    %v213 = vmul.f32 %v212, %v208
    %v214 = vadd.f32 %v145, %v213
    %v215 = vlaneseq
    %v216 = vshrl.u32 %v215, 7
    %v217 = vsub.s32 2, %v216
    %v218 = vrot.slane %v75, %v217
    %v219 = vsub.f32 %v71, %v218
    %v220 = vlaneseq
    %v221 = vshrl.u32 %v220, 7
    %v222 = vsub.s32 2, %v221
    %v223 = vrot.slane %v76, %v222
    %v224 = vmul.f32 %v219, %v223
    %v225 = vand.u32 2147483647, %v224
    %v226 = vmul.f32 %v225, 0.3275911
    %v227 = vadd.f32 %v226, 1.0
    %v228 = vrcp.pop %v227
    %v229 = vmul.f32 %v227, %v228
    %v230 = vsub.f32 2.0, %v229
    %v231 = vmul.f32 %v228, %v230
    %v232 = vmul.f32 %v231, 1.0614054
    %v233 = vadd.f32 %v232, -1.4531521
    %v234 = vmul.f32 %v233, %v231
    %v235 = vadd.f32 %v234, 1.4214138
    %v236 = vmul.f32 %v235, %v231
    %v237 = vadd.f32 %v236, -0.28449672
    %v238 = vmul.f32 %v237, %v231
    %v239 = vadd.f32 %v238, 0.2548296
    %v240 = vmul.f32 %v239, %v231
    %v241 = vmul.f32 %v225, %v225
    %v242 = vsub.f32 0.0, %v241
    %v243 = vmul.f32 %v242, 1.442695
    %v244 = vpow.pop %v243
    %v245 = vmul.f32 %v240, %v244
    %v246 = vsub.f32 1.0, %v245
    %vm247 = vcmp.lt.f32.partialorder %v224, 0.0
    %v248 = vsub.f32 0.0, %v246
    %v249 = vsel %vm247, %v248, %v246
    %v250 = vsub.f32 %v72, %v218
    %v251 = vmul.f32 %v250, %v223
    %v252 = vand.u32 2147483647, %v251
    %v253 = vmul.f32 %v252, 0.3275911
    %v254 = vadd.f32 %v253, 1.0
    %v255 = vrcp.pop %v254
    %v256 = vmul.f32 %v254, %v255
    %v257 = vsub.f32 2.0, %v256
    %v258 = vmul.f32 %v255, %v257
    %v259 = vmul.f32 %v258, 1.0614054
    %v260 = vadd.f32 %v259, -1.4531521
    %v261 = vmul.f32 %v260, %v258
    %v262 = vadd.f32 %v261, 1.4214138
    %v263 = vmul.f32 %v262, %v258
    %v264 = vadd.f32 %v263, -0.28449672
    %v265 = vmul.f32 %v264, %v258
    %v266 = vadd.f32 %v265, 0.2548296
    %v267 = vmul.f32 %v266, %v258
    %v268 = vmul.f32 %v252, %v252
    %v269 = vsub.f32 0.0, %v268
    %v270 = vmul.f32 %v269, 1.442695
    %v271 = vpow.pop %v270
    %v272 = vmul.f32 %v267, %v271
    %v273 = vsub.f32 1.0, %v272
    %vm274 = vcmp.lt.f32.partialorder %v251, 0.0
    %v275 = vsub.f32 0.0, %v273
    %v276 = vsel %vm274, %v275, %v273
    %v277 = vsub.f32 %v249, %v276
    %v278 = vlaneseq
    %v279 = vshrl.u32 %v278, 7
    %v280 = vsub.s32 2, %v279
    %v281 = vrot.slane %v74, %v280
    %v282 = vmul.f32 %v281, %v277
    %v283 = vadd.f32 %v214, %v282
    %v284 = vlaneseq
    %v285 = vshrl.u32 %v284, 7
    %v286 = vsub.s32 3, %v285
    %v287 = vrot.slane %v75, %v286
    %v288 = vsub.f32 %v71, %v287
    %v289 = vlaneseq
    %v290 = vshrl.u32 %v289, 7
    %v291 = vsub.s32 3, %v290
    %v292 = vrot.slane %v76, %v291
    %v293 = vmul.f32 %v288, %v292
    %v294 = vand.u32 2147483647, %v293
    %v295 = vmul.f32 %v294, 0.3275911
    %v296 = vadd.f32 %v295, 1.0
    %v297 = vrcp.pop %v296
    %v298 = vmul.f32 %v296, %v297
    %v299 = vsub.f32 2.0, %v298
    %v300 = vmul.f32 %v297, %v299
    %v301 = vmul.f32 %v300, 1.0614054
    %v302 = vadd.f32 %v301, -1.4531521
    %v303 = vmul.f32 %v302, %v300
    %v304 = vadd.f32 %v303, 1.4214138
    %v305 = vmul.f32 %v304, %v300
    %v306 = vadd.f32 %v305, -0.28449672
    %v307 = vmul.f32 %v306, %v300
    %v308 = vadd.f32 %v307, 0.2548296
    %v309 = vmul.f32 %v308, %v300
    %v310 = vmul.f32 %v294, %v294
    %v311 = vsub.f32 0.0, %v310
    %v312 = vmul.f32 %v311, 1.442695
    %v313 = vpow.pop %v312
    %v314 = vmul.f32 %v309, %v313
    %v315 = vsub.f32 1.0, %v314
    %vm316 = vcmp.lt.f32.partialorder %v293, 0.0
    %v317 = vsub.f32 0.0, %v315
    %v318 = vsel %vm316, %v317, %v315
    %v319 = vsub.f32 %v72, %v287
    %v320 = vmul.f32 %v319, %v292
    %v321 = vand.u32 2147483647, %v320
    %v322 = vmul.f32 %v321, 0.3275911
    %v323 = vadd.f32 %v322, 1.0
    %v324 = vrcp.pop %v323
    %v325 = vmul.f32 %v323, %v324
    %v326 = vsub.f32 2.0, %v325
    %v327 = vmul.f32 %v324, %v326
    %v328 = vmul.f32 %v327, 1.0614054
    %v329 = vadd.f32 %v328, -1.4531521
    %v330 = vmul.f32 %v329, %v327
    %v331 = vadd.f32 %v330, 1.4214138
    %v332 = vmul.f32 %v331, %v327
    %v333 = vadd.f32 %v332, -0.28449672
    %v334 = vmul.f32 %v333, %v327
    %v335 = vadd.f32 %v334, 0.2548296
    %v336 = vmul.f32 %v335, %v327
    %v337 = vmul.f32 %v321, %v321
    %v338 = vsub.f32 0.0, %v337
    %v339 = vmul.f32 %v338, 1.442695
    %v340 = vpow.pop %v339
    %v341 = vmul.f32 %v336, %v340
    %v342 = vsub.f32 1.0, %v341
    %vm343 = vcmp.lt.f32.partialorder %v320, 0.0
    %v344 = vsub.f32 0.0, %v342
    %v345 = vsel %vm343, %v344, %v342
    %v346 = vsub.f32 %v318, %v345
    %v347 = vlaneseq
    %v348 = vshrl.u32 %v347, 7
    %v349 = vsub.s32 3, %v348
    %v350 = vrot.slane %v74, %v349
    %v351 = vmul.f32 %v350, %v346
    %v352 = vadd.f32 %v283, %v351
    %v353 = vmul.f32 %v352, %v352
    %v354 = vmul.f32 %v73, %v353
    %vm355 = vcmask 1043456
    %v356 = vsel %vm355, %v354, 0.0
    %v357 = vrot.slane %v356, 4
    %v358 = vadd.f32 %v356, %v357
    %v359 = vrot.slane %v358, 2
    %v360 = vadd.f32 %v358, %v359
    %v361 = vrot.slane %v360, 1
    %v362 = vadd.f32 %v360, %v361
    %v363 = vsel %vm355, %v73, 0.0
    %v364 = vrot.slane %v363, 4
    %v365 = vadd.f32 %v363, %v364
    %v366 = vrot.slane %v365, 2
    %v367 = vadd.f32 %v365, %v366
    %v368 = vrot.slane %v367, 1
    %v369 = vadd.f32 %v367, %v368
    %370 = vst [vmem:[#allocation10] sm:$0x1] %v362
    %371 = vst [vmem:[#allocation10 + $0x1] sm:$0x1] %v369
    // Predicated region
    $region42: #{tpu_custom_call.1} parent=1 // pred_check
      _
    $region43: #{tpu_custom_call.1} parent=1 // pred_check_branch
      %373 = sbr.rel (0) target = $region45
    $region44: #{tpu_custom_call.1} parent=1 // pred_region
      %s375 = ssub.s32 32, 32
      %376 = vsyncadd [#allocation4], %s375
      %s378 = sshll.u32 [#allocation10], 4
      %s379 = int_to_ptr.vmem [resolvable:$true] %s378
      %381 = dma.vmem_to_hbm [thread:$0]  %s379, 32, %s6, [#allocation4]
    $region45: #{tpu_custom_call.1} parent=1 // pred_fallthru
      _
    // Predicated region
    $region46: #{tpu_custom_call.1} parent=1 // pred_check
      _
    $region47: #{tpu_custom_call.1} parent=1 // pred_check_branch
      %383 = sbr.rel (0) target = $region49
    $region48: #{tpu_custom_call.1} parent=1 // pred_region
      %384 = dma.done [#allocation4], 32
    $region49: #{tpu_custom_call.1} parent=1 // pred_fallthru
      _
    %385 = vsyncpa [#allocation3], 1
    %386 = vsyncpa [#allocation6], 1
    %387 = vsyncpa [#allocation9], 1
    %388 = vsyncpa [#allocation4], 1

</llo_original>
